<compile_context>
chip_gen: v7x
topology: tpu7x:2x2x1
jax: 0.10.0
libtpu: 0.0.40
codegen_flags: <defaults>
</compile_context>

<pallas_src>
import jax
import jax.numpy as jnp
import numpy as np
from jax import lax
from jax.experimental import pallas as pl
from jax.experimental.pallas import tpu as pltpu


# ---------------------------------------------------------------------------
# Kernels
# ---------------------------------------------------------------------------

def _sincos_pe_kernel(fp_ref, o_ref):
    """Writes one (TS, D) tile of the positional-encoding table.

    fp_ref: (2, D) f32 VMEM-resident constants (constant index_map):
            row 0 = inv_freq[d] = 10000 ** (-2*(d//2)/d_model)
            row 1 = parity[d]   = d % 2   (1.0 -> odd lane -> cos)
    o_ref : (TS, D) output tile; rows are absolute positions
            [program_id(0)*TS, ...).
    """
    ts, _ = o_ref.shape
    seq_start = pl.program_id(0) * ts
    # (TS, 1) position column: iota + add + convert on a single lane only.
    pos = (lax.broadcasted_iota(jnp.int32, (ts, 1), 0) + seq_start).astype(jnp.float32)

    inv_freq = fp_ref[0:1, :]      # (1, D)
    is_odd = fp_ref[1:2, :] > 0.5  # (1, D) bool

    angle = pos * inv_freq                      # (TS,1)*(1,D) -> (TS,D), VPU
    pe = jnp.where(is_odd, jnp.cos(angle), jnp.sin(angle))
    o_ref[...] = pe.astype(o_ref.dtype)


def _add_pe_kernel(fp_ref, x_ref, o_ref):
    """Fused x + positional_encoding for one (1, TS, D) activation tile."""
    _, ts, _ = x_ref.shape
    seq_start = pl.program_id(1) * ts
    pos = (lax.broadcasted_iota(jnp.int32, (ts, 1), 0) + seq_start).astype(jnp.float32)

    inv_freq = fp_ref[0:1, :]
    is_odd = fp_ref[1:2, :] > 0.5

    angle = pos * inv_freq
    pe = jnp.where(is_odd, jnp.cos(angle), jnp.sin(angle))     # (TS, D) f32
    o_ref[...] = (x_ref[...].astype(jnp.float32) + pe[None, :, :]).astype(o_ref.dtype)


# ---------------------------------------------------------------------------
# Wrappers
# ---------------------------------------------------------------------------

def _lane_constants(d_model: int) -> jax.Array:
    """(2, d_model) f32: row 0 = inv_freq per lane, row 1 = parity per lane."""
    d_idx = jnp.arange(d_model, dtype=jnp.int32)
    k = (d_idx // 2).astype(jnp.float32)
    inv_freq = jnp.float32(10000.0) ** (-2.0 * k / jnp.float32(d_model))
    parity = (d_idx % 2).astype(jnp.float32)
    return jnp.stack([inv_freq, parity], axis=0)


def _tile_rows(seq_len: int, d_model: int, dtype) -> int:
    """Sequence tile height: sublane-aligned, >=4 tiles for seq>64, <=~8MiB."""
    itemsize = jnp.dtype(dtype).itemsize
    sublane = 16 if itemsize == 2 else 8          # bf16 packs 16 rows / vreg
    if seq_len <= 64:
        return seq_len                            # single tile, full extent
    bytes_per_row = max(d_model * itemsize, 1)
    cap_rows = max(sublane, ((8 * 1024 * 1024) // bytes_per_row) // sublane * sublane)
    quarter = max(sublane, (seq_len // 4) // sublane * sublane)
    return min(quarter, cap_rows)


def sincos_pe_table(seq_len: int, d_model: int, *, dtype=jnp.float32,
                    interpret: bool = False) -> jax.Array:
    """Computes the (seq_len, d_model) sin/cos table with a Pallas kernel."""
    consts = _lane_constants(d_model)
    ts = _tile_rows(seq_len, d_model, dtype)
    num_tiles = pl.cdiv(seq_len, ts)

    return pl.pallas_call(
        _sincos_pe_kernel,
        out_shape=jax.ShapeDtypeStruct((seq_len, d_model), dtype),
        grid_spec=pltpu.PrefetchScalarGridSpec(
            num_scalar_prefetch=0,
            grid=(num_tiles,),
            in_specs=[pl.BlockSpec((2, d_model), lambda i: (0, 0))],
            out_specs=pl.BlockSpec((ts, d_model), lambda i: (i, 0)),
        ),
        compiler_params=pltpu.CompilerParams(
            dimension_semantics=("parallel",),     # split tiles across TCs
            vmem_limit_bytes=32 * 1024 * 1024,
        ),
        interpret=interpret,
    )(consts)


def add_sincos_positional_encoding(x: jax.Array, *, max_seq_len: int = 1024,
                                   interpret: bool = False) -> jax.Array:
    """Fused `x + positional_encoding` — never materializes the PE in HBM."""
    batch, seq_len, d_model = x.shape
    assert seq_len <= max_seq_len, "seq_len exceeds max_seq_len"
    consts = _lane_constants(d_model)
    ts = _tile_rows(seq_len, d_model, x.dtype)
    num_tiles = pl.cdiv(seq_len, ts)

    return pl.pallas_call(
        _add_pe_kernel,
        out_shape=jax.ShapeDtypeStruct((batch, seq_len, d_model), x.dtype),
        grid_spec=pltpu.PrefetchScalarGridSpec(
            num_scalar_prefetch=0,
            grid=(batch, num_tiles),
            in_specs=[pl.BlockSpec((2, d_model), lambda b, i: (0, 0)),
                      pl.BlockSpec((1, ts, d_model), lambda b, i: (b, i, 0))],
            out_specs=pl.BlockSpec((1, ts, d_model), lambda b, i: (b, i, 0)),
        ),
        compiler_params=pltpu.CompilerParams(
            dimension_semantics=("parallel", "parallel"),
            vmem_limit_bytes=32 * 1024 * 1024,
        ),
        interpret=interpret,
    )(consts, x)


def sincos_positional_encoding(inputs: jax.Array, d_model: int,
                               max_seq_len: int = 1024,
                               dtype=jnp.float32) -> jax.Array:
    """Module-faithful forward: returns the PE repeated over the batch.

    NOTE (perf): prefer `sincos_pe_table()` (broadcast lazily at the add site)
    or `add_sincos_positional_encoding()` (fused x + pe). Returning the
    broadcast from a jit boundary can force XLA to materialize the full
    B x S x D tensor in HBM, i.e. batch x the kernel's writeback.
    """
    batch, seq_len = inputs.shape[0], inputs.shape[1]
    assert seq_len <= max_seq_len, "seq_len exceeds max_seq_len"
    table = sincos_pe_table(seq_len, d_model, dtype=dtype)   # (S, D), batch-free
    return jnp.broadcast_to(table[None], (batch, seq_len, d_model))


# ---------------------------------------------------------------------------
# Self-test
# ---------------------------------------------------------------------------

def _reference_table_f64(seq_len: int, d_model: int) -> np.ndarray:
    """float64 ground truth mirroring the PyTorch buffer construction."""
    d = np.arange(d_model)
    k = d // 2
    inv_freq = 10000.0 ** (-2.0 * k / float(d_model))        # 1 / 10000**(2k/D)
    pos = np.arange(seq_len, dtype=np.float64)[:, None]
    ang = pos * inv_freq[None, :]
    return np.where(d % 2 == 1, np.cos(ang), np.sin(ang))


if __name__ == "__main__":
    eps32 = float(np.finfo(np.float32).eps)
    key = jax.random.PRNGKey(0)

    # 1) Module-faithful forward at a small shape (batch=2, seq=8, d_model=32).
    batch, seq_len, d_model = 2, 8, 32
    inputs = jax.random.randint(key, (batch, seq_len), 0, 1024, dtype=jnp.int32)
    out = jax.block_until_ready(sincos_positional_encoding(inputs, d_model))
    ref = np.broadcast_to(_reference_table_f64(seq_len, d_model)[None],
                          (batch, seq_len, d_model))
    assert out.shape == (batch, seq_len, d_model)
    assert out.dtype == jnp.float32
    # Tolerance: f32 angle rounding grows ~pos*eps; scale with seq_len.
    tol = 1e-5 + 8.0 * seq_len * eps32
    assert np.max(np.abs(np.asarray(out, dtype=np.float64) - ref)) < tol

    # 2) Tiled path: seq=1000 (multi-tile grid + partial last tile), D=128, f32.
    t2 = jax.block_until_ready(sincos_pe_table(1000, 128))
    r2 = _reference_table_f64(1000, 128)
    tol2 = 1e-5 + 8.0 * 1000 * eps32
    assert t2.shape == (1000, 128)
    assert np.max(np.abs(np.asarray(t2, dtype=np.float64) - r2)) < tol2

    # 3) Fused x + pe in bf16 (batch grid dim, 16-row sublane tiles).
    x = jax.random.normal(jax.random.PRNGKey(1), (2, 256, 128),
                          dtype=jnp.float32).astype(jnp.bfloat16)
    y = jax.block_until_ready(add_sincos_positional_encoding(x))
    assert y.shape == (2, 256, 128) and y.dtype == jnp.bfloat16
    xf = np.asarray(x.astype(jnp.float32), dtype=np.float64)
    r3 = xf + _reference_table_f64(256, 128)[None]
    yf = np.asarray(y.astype(jnp.float32), dtype=np.float64)
    assert np.max(np.abs(yf - r3)) < 2.5e-2       # bf16 output rounding

    print("KERNEL_OK")
</pallas_src>

<mosaic_0001>
module attributes {stable_mosaic.version = 11 : i64} {
  func.func @_sincos_pe_kernel(%arg0: i32, %arg1: memref<2x32xf32, #tpu.memory_space<vmem>>, %arg2: memref<8x32xf32, #tpu.memory_space<vmem>>) attributes {dimension_semantics = [#tpu.dimension_semantics<parallel>], iteration_bounds = array<i64: 1>, scalar_prefetch = 0 : i64, scratch_operands = 0 : i64, tpu.core_type = #tpu.core_type<tc>, window_params = [{pipeline_mode = #tpu.pipeline_mode<synchronous>, transform_indices = @transform_0, window_bounds = array<i64: 2, 32>}, {transform_indices = @transform_1, window_bounds = array<i64: 8, 32>}]} {
    %c8_i32 = arith.constant 8 : i32
    %0 = arith.muli %arg0, %c8_i32 : i32
    %1 = tpu.iota {dimensions = array<i32: 0>} : vector<8x1xi32>
    %2 = vector.broadcast %0 : i32 to vector<8x1xi32>
    %3 = arith.addi %1, %2 : vector<8x1xi32>
    %4 = arith.sitofp %3 : vector<8x1xi32> to vector<8x1xf32>
    %c0 = arith.constant 0 : index
    %c0_0 = arith.constant 0 : index
    %5 = vector.load %arg1[%c0, %c0_0] : memref<2x32xf32, #tpu.memory_space<vmem>>, vector<1x32xf32>
    %c1 = arith.constant 1 : index
    %c0_1 = arith.constant 0 : index
    %6 = vector.load %arg1[%c1, %c0_1] : memref<2x32xf32, #tpu.memory_space<vmem>>, vector<1x32xf32>
    %cst = arith.constant 5.000000e-01 : f32
    %7 = vector.broadcast %cst : f32 to vector<1x32xf32>
    %8 = arith.cmpf ogt, %6, %7 : vector<1x32xf32>
    %9 = vector.broadcast %4 : vector<8x1xf32> to vector<8x32xf32>
    %10 = vector.broadcast %5 : vector<1x32xf32> to vector<8x32xf32>
    %11 = arith.mulf %9, %10 : vector<8x32xf32>
    %12 = math.cos %11 : vector<8x32xf32>
    %13 = math.sin %11 : vector<8x32xf32>
    %14 = vector.shape_cast %8 : vector<1x32xi1> to vector<1x32xi1>
    %15 = vector.broadcast %14 : vector<1x32xi1> to vector<8x32xi1>
    %16 = arith.select %15, %12, %13 : vector<8x32xi1>, vector<8x32xf32>
    %c0_2 = arith.constant 0 : index
    %c0_3 = arith.constant 0 : index
    %17 = vector.load %arg2[%c0_2, %c0_3] : memref<8x32xf32, #tpu.memory_space<vmem>>, vector<8x32xf32>
    tpu.vector_store %arg2[%c0_2, %c0_3], %16 {strides = array<i32>} : memref<8x32xf32, #tpu.memory_space<vmem>>, vector<8x32xf32>,
    return
  }
  func.func @transform_0(%arg0: i32) -> (i32, i32) {
    %c0_i32 = arith.constant 0 : i32
    %c0_i32_0 = arith.constant 0 : i32
    %c0_i32_1 = arith.constant 0 : i32
    return %c0_i32, %c0_i32_0 : i32, i32
  }
  func.func @transform_1(%arg0: i32) -> (i32, i32) {
    %c0_i32 = arith.constant 0 : i32
    %c0_i32_0 = arith.constant 0 : i32
    return %arg0, %c0_i32 : i32, i32
  }
}

</mosaic_0001>

<llo_original>
// kernel: tpu_custom_call.1
$region0: #{tpu_custom_call.1}
  #allocation0 [shape = 'u32[]', space=smem, size = 0x4, offset = 0x4, fixed_abs, tag = 'smem constant byte address 0x4 - core index']
  #allocation1 [shape = 'u32[144,128]{1,0:T(1,128)}', space=vmem, size = 0x12000, scoped, tag = 'internal scratch']
  %s0 = inlined_call_operand.hbm [shape: f32[2,32], index: 0, kind: input, shape index: {}]
  %s1 = inlined_call_operand.hbm [shape: f32[8,32], index: 1, kind: output, shape index: {}]
  %s2 = sld [smem:[#allocation0]]
  $region18: #{tpu_custom_call.1} parent=0
    _
  %s4 = ssub.s32 1, %s2
  %s5 = scalar_select 0, %s4, %s2
  $region1: #{tpu_custom_call.1} parent=0
    #allocation2 [shape = 'u8[1024]{0}', space=vmem, size = 0x400, scoped, tag = 'input window, operand 0, single buffered']
    #allocation3 [shape = 's32[1]{0}', space=sflag, size = 0x4, scoped, tag = 'scoped memory for tpu_custom_call.1']
    #allocation4 [shape = 's32[1]{0}', space=sflag, size = 0x4, scoped, tag = 'scoped memory for tpu_custom_call.1']
    #allocation5 [shape = 'u8[4096]{0}', space=vmem, size = 0x1000, scoped, tag = 'output window, operand 0, single buffered']
    %6 = vsyncpa [#allocation3], 0
    %7 = vsyncpa [#allocation4], 0
    // Predicated region
    $region2: #{tpu_custom_call.1} parent=1 // pred_check
      _
    $region3: #{tpu_custom_call.1} parent=1 // pred_check_branch
      %9 = sbr.rel (0) target = $region5
    $region4: #{tpu_custom_call.1} parent=1 // pred_region
      %s11 = ssub.s32 32, 32
      %12 = vsyncadd [#allocation3], %s11
      %s14 = sshll.u32 [#allocation2], 4
      %s15 = int_to_ptr.vmem [resolvable:$true] %s14
      %17 = dma.hbm_to_vmem [thread:$0]  %s0, 32, %s15, [#allocation3]
    $region5: #{tpu_custom_call.1} parent=1 // pred_fallthru
      _
    // Predicated region
    $region6: #{tpu_custom_call.1} parent=1 // pred_check
      _
    $region7: #{tpu_custom_call.1} parent=1 // pred_check_branch
      %19 = sbr.rel (0) target = $region9
    $region8: #{tpu_custom_call.1} parent=1 // pred_region
      %20 = dma.done [#allocation3], 32
    $region9: #{tpu_custom_call.1} parent=1 // pred_fallthru
      _
    %s21 = smul.u32 0, 8
    %v22 = vlaneseq
    %v23 = vshrl.u32 %v22, 7
    %v24 = vstv %s21
    %v25 = vadd.s32 %v23, %v24
    %v26 = vcvt.s32.f32 %v25
    %v27 = vld [vmem:[#allocation2] sm:$0x1]
    %v28 = vld [vmem:[#allocation2 + $0x1] sm:$0x1]
    %vm29 = vcmp.gt.f32.partialorder %v28, 0.5
    %v30 = vlaneseq
    %v31 = vshrl.u32 %v30, 7
    %v32 = vsub.s32 0, %v31
    %v33 = vrot.slane %v27, %v32
    %v34 = vmul.f32 %v26, %v33
    %v35 = vand.u32 2147483647, %v34
    %vm36 = vcmp.le.f32.partialorder %v35, 0.7853982
    %vm37 = vcmp.lt.s32.totalorder %v34, 0
    %v38 = vand.u32 %v34, 2139095040
    %v39 = vshrl.u32 %v38, 23
    %v40 = vsub.s32 %v39, 127
    %v41 = vand.u32 2147483647, %v34
    %v42 = vand.u32 %v41, 8388607
    %v43 = vor.u32 %v42, 8388608
    %v44 = vsub.s32 0, %v43
    %v45 = vadd.s32 %v40, 1
    %vm46 = vcmp.gt.s32.totalorder %v45, 0
    %v47 = vsel %vm46, %v45, 0
    %v48 = vshrl.u32 %v47, 5
    %v49 = vand.u32 %v47, 31
    %v50 = vsub.s32 32, %v49
    %v51 = vshrl.u32 683565275, %v50
    %v52 = vshll.u32 683565275, %v49
    %v53 = vshrl.u32 2475754826, %v50
    %v54 = vor.u32 %v52, %v53
    %v55 = vshll.u32 2475754826, %v49
    %v56 = vshrl.u32 2131351028, %v50
    %v57 = vor.u32 %v55, %v56
    %v58 = vshll.u32 2131351028, %v49
    %v59 = vshrl.u32 2102212464, %v50
    %v60 = vor.u32 %v58, %v59
    %v61 = vshll.u32 2102212464, %v49
    %v62 = vshrl.u32 920167782, %v50
    %v63 = vor.u32 %v61, %v62
    %v64 = vshll.u32 920167782, %v49
    %v65 = vshrl.u32 1326507024, %v50
    %v66 = vor.u32 %v64, %v65
    %vm67 = vcmp.lt.s32.totalorder %v48, 1
    %vm68 = vcmp.lt.s32.totalorder %v48, 2
    %vm69 = vcmp.lt.s32.totalorder %v48, 3
    %vm70 = vcmp.lt.s32.totalorder %v48, 4
    %v71 = vsel %vm67, %v51, %v54
    %v72 = vsel %vm70, %v60, 2102212464
    %v73 = vsel %vm69, %v57, %v72
    %v74 = vsel %vm68, %v71, %v73
    %v75 = vsel %vm67, %v54, %v57
    %v76 = vsel %vm70, %v63, 920167782
    %v77 = vsel %vm69, %v60, %v76
    %v78 = vsel %vm68, %v75, %v77
    %v79 = vsel %vm67, %v57, %v60
    %v80 = vsel %vm70, %v66, 1326507024
    %v81 = vsel %vm69, %v63, %v80
    %v82 = vsel %vm68, %v79, %v81
    %v83 = vshll.u32 %v43, 8
    %v84 = vmul.u32.u64.compose %v83, %v82
    %v85 = vextract.low.u32 %v84
    %v86 = vextract.high.u32 %v84
    %v87 = vmul.u32.u64.compose %v83, %v78
    %v88 = vextract.low.u32 %v87
    %v89 = vextract.high.u32 %v87
    %v90 = vmul.u32 %v83, %v74
    %v91 = vadd.s32 %v86, %v88
    %vm92 = vc.u32 %v86, %v88
    %v93 = vadd.s32 %v89, 1
    %v94 = vsel %vm92, %v93, %v89
    %v95 = vadd.s32 %v90, %v94
    %v96 = vadd.s32 %v95, 536870912
    %v97 = vshrl.u32 %v96, 30
    %v98 = vshll.u32 %v97, 30
    %v99 = vsub.s32 %v95, %v98
    %vm100 = vcmp.lt.s32.totalorder %v99, 0
    %v101 = vsub.s32 0, %v99
    %v102 = vsel %vm100, %v101, %v99
    %v103 = vclz %v102
    %v104 = vsub.s32 %v103, 2
    %vm105 = vcmp.gt.s32.totalorder 0, %v104
    %v106 = vsel %vm105, 0, %v104
    %v107 = vsub.s32 32, %v106
    %v108 = vshll.u32 %v99, %v106
    %v109 = vshrl.u32 %v91, %v107
    %v110 = vor.u32 %v108, %v109
    %v111 = vsub.s32 4294967266, %v106
    %v112 = vadd.s32 %v111, 127
    %v113 = vshll.u32 %v112, 23
    %v114 = vor.u32 4788187, %v113
    %v115 = vand.u32 2147483647, %v114
    %v117 = vcvt.s32.f32 %v110
    %v118 = vmul.f32 %v117, %v115
    %v119 = vxor.u32 %v118, 2147483648
    %v120 = vsel %vm37, %v119, %v118
    %v121 = vsub.s32 4, %v97
    %v122 = vsel %vm37, %v121, %v97
    %v123 = vsel %vm36, %v34, %v120
    %v124 = vsel %vm36, 0, %v122
    %v125 = vcosq.f32.pop %v123
    %v126 = vsinq.f32.pop %v123
    %vm127 = vweird.f32 %v34
    %v128 = vand.u32 %v124, 3
    %vm129 = vcmp.lt.s32.totalorder %v128, 2
    %vm130 = vcmp.eq.s32.totalorder %v128, 0
    %v131 = vxor.u32 %v126, 2147483648
    %v132 = vsel %vm130, %v125, %v131
    %vm133 = vcmp.eq.s32.totalorder %v128, 2
    %v134 = vxor.u32 %v125, 2147483648
    %v135 = vsel %vm133, %v134, %v126
    %v136 = vsel %vm129, %v132, %v135
    %v137 = vsel %vm127, nan, %v136
    %v138 = vand.u32 2147483647, %v34
    %vm139 = vcmp.le.f32.partialorder %v138, 0.7853982
    %vm140 = vcmp.lt.s32.totalorder %v34, 0
    %v141 = vand.u32 %v34, 2139095040
    %v142 = vshrl.u32 %v141, 23
    %v143 = vsub.s32 %v142, 127
    %v144 = vand.u32 2147483647, %v34
    %v145 = vand.u32 %v144, 8388607
    %v146 = vor.u32 %v145, 8388608
    %v147 = vsub.s32 0, %v146
    %v148 = vadd.s32 %v143, 1
    %vm149 = vcmp.gt.s32.totalorder %v148, 0
    %v150 = vsel %vm149, %v148, 0
    %v151 = vshrl.u32 %v150, 5
    %v152 = vand.u32 %v150, 31
    %v153 = vsub.s32 32, %v152
    %v154 = vshrl.u32 683565275, %v153
    %v155 = vshll.u32 683565275, %v152
    %v156 = vshrl.u32 2475754826, %v153
    %v157 = vor.u32 %v155, %v156
    %v158 = vshll.u32 2475754826, %v152
    %v159 = vshrl.u32 2131351028, %v153
    %v160 = vor.u32 %v158, %v159
    %v161 = vshll.u32 2131351028, %v152
    %v162 = vshrl.u32 2102212464, %v153
    %v163 = vor.u32 %v161, %v162
    %v164 = vshll.u32 2102212464, %v152
    %v165 = vshrl.u32 920167782, %v153
    %v166 = vor.u32 %v164, %v165
    %v167 = vshll.u32 920167782, %v152
    %v168 = vshrl.u32 1326507024, %v153
    %v169 = vor.u32 %v167, %v168
    %vm170 = vcmp.lt.s32.totalorder %v151, 1
    %vm171 = vcmp.lt.s32.totalorder %v151, 2
    %vm172 = vcmp.lt.s32.totalorder %v151, 3
    %vm173 = vcmp.lt.s32.totalorder %v151, 4
    %v174 = vsel %vm170, %v154, %v157
    %v175 = vsel %vm173, %v163, 2102212464
    %v176 = vsel %vm172, %v160, %v175
    %v177 = vsel %vm171, %v174, %v176
    %v178 = vsel %vm170, %v157, %v160
    %v179 = vsel %vm173, %v166, 920167782
    %v180 = vsel %vm172, %v163, %v179
    %v181 = vsel %vm171, %v178, %v180
    %v182 = vsel %vm170, %v160, %v163
    %v183 = vsel %vm173, %v169, 1326507024
    %v184 = vsel %vm172, %v166, %v183
    %v185 = vsel %vm171, %v182, %v184
    %v186 = vshll.u32 %v146, 8
    %v187 = vmul.u32.u64.compose %v186, %v185
    %v188 = vextract.low.u32 %v187
    %v189 = vextract.high.u32 %v187
    %v190 = vmul.u32.u64.compose %v186, %v181
    %v191 = vextract.low.u32 %v190
    %v192 = vextract.high.u32 %v190
    %v193 = vmul.u32 %v186, %v177
    %v194 = vadd.s32 %v189, %v191
    %vm195 = vc.u32 %v189, %v191
    %v196 = vadd.s32 %v192, 1
    %v197 = vsel %vm195, %v196, %v192
    %v198 = vadd.s32 %v193, %v197
    %v199 = vadd.s32 %v198, 536870912
    %v200 = vshrl.u32 %v199, 30
    %v201 = vshll.u32 %v200, 30
    %v202 = vsub.s32 %v198, %v201
    %vm203 = vcmp.lt.s32.totalorder %v202, 0
    %v204 = vsub.s32 0, %v202
    %v205 = vsel %vm203, %v204, %v202
    %v206 = vclz %v205
    %v207 = vsub.s32 %v206, 2
    %vm208 = vcmp.gt.s32.totalorder 0, %v207
    %v209 = vsel %vm208, 0, %v207
    %v210 = vsub.s32 32, %v209
    %v211 = vshll.u32 %v202, %v209
    %v212 = vshrl.u32 %v194, %v210
    %v213 = vor.u32 %v211, %v212
    %v214 = vsub.s32 4294967266, %v209
    %v215 = vadd.s32 %v214, 127
    %v216 = vshll.u32 %v215, 23
    %v217 = vor.u32 4788187, %v216
    %v218 = vand.u32 2147483647, %v217
    %v220 = vcvt.s32.f32 %v213
    %v221 = vmul.f32 %v220, %v218
    %v222 = vxor.u32 %v221, 2147483648
    %v223 = vsel %vm140, %v222, %v221
    %v224 = vsub.s32 4, %v200
    %v225 = vsel %vm140, %v224, %v200
    %v226 = vsel %vm139, %v34, %v223
    %v227 = vsel %vm139, 0, %v225
    %v228 = vcosq.f32.pop %v226
    %v229 = vsinq.f32.pop %v226
    %vm230 = vweird.f32 %v34
    %v231 = vadd.s32 %v227, 3
    %v232 = vand.u32 %v231, 3
    %vm233 = vcmp.lt.s32.totalorder %v232, 2
    %vm234 = vcmp.eq.s32.totalorder %v232, 0
    %v235 = vxor.u32 %v229, 2147483648
    %v236 = vsel %vm234, %v228, %v235
    %vm237 = vcmp.eq.s32.totalorder %v232, 2
    %v238 = vxor.u32 %v228, 2147483648
    %v239 = vsel %vm237, %v238, %v229
    %v240 = vsel %vm233, %v236, %v239
    %v241 = vsel %vm230, nan, %v240
    %v242 = vsel %vm29, 1, 0
    %v243 = vlaneseq
    %v244 = vshrl.u32 %v243, 7
    %v245 = vsub.s32 0, %v244
    %v246 = vrot.slane %v242, %v245
    %vm247 = vcmp.eq.s32.totalorder %v246, 1
    %v248 = vsel %vm247, %v137, %v241
    %vm249 = vcmask 261120
    %250 = vst.msk [vmem:[#allocation5] sm:$0xff] %vm249, %v248
    // Predicated region
    $region10: #{tpu_custom_call.1} parent=1 // pred_check
      _
    $region11: #{tpu_custom_call.1} parent=1 // pred_check_branch
      %252 = sbr.rel (0) target = $region13
    $region12: #{tpu_custom_call.1} parent=1 // pred_region
      %s254 = ssub.s32 128, 128
      %255 = vsyncadd [#allocation4], %s254
      %s257 = sshll.u32 [#allocation5], 4
      %s258 = int_to_ptr.vmem [resolvable:$true] %s257
      %260 = dma.vmem_to_hbm [thread:$0]  %s258, 128, %s1, [#allocation4]
    $region13: #{tpu_custom_call.1} parent=1 // pred_fallthru
      _
    // Predicated region
    $region14: #{tpu_custom_call.1} parent=1 // pred_check
      _
    $region15: #{tpu_custom_call.1} parent=1 // pred_check_branch
      %262 = sbr.rel (0) target = $region17
    $region16: #{tpu_custom_call.1} parent=1 // pred_region
      %263 = dma.done [#allocation4], 128
    $region17: #{tpu_custom_call.1} parent=1 // pred_fallthru
      _
    %264 = vsyncpa [#allocation3], 1
    %265 = vsyncpa [#allocation4], 1

</llo_original>
